<compile_context>
chip_gen: v7x
topology: tpu7x:2x2x1
jax: 0.10.0
libtpu: 0.0.40
codegen_flags: <defaults>
</compile_context>

<pallas_src>
import jax
import jax.numpy as jnp
import numpy as np
from jax import lax
from jax.experimental import pallas as pl
from jax.experimental.pallas import tpu as pltpu


def _tangent_flow_kernel(x_ref, o_ref):
    # x_ref: (1, 3, TR, L)   o_ref: (1, 2, TR, L)
    compute = jnp.float32
    # Match torch.finfo(b.dtype).eps, where b has the input dtype.
    eps = jnp.asarray(jnp.finfo(x_ref.dtype).eps, compute)
    tiny = jnp.asarray(jnp.finfo(compute).tiny, compute)

    gx = x_ref[0, 0, :, :].astype(compute)
    gy = x_ref[0, 1, :, :].astype(compute)
    gz = x_ref[0, 2, :, :].astype(compute)

    a = gy - gx
    b = -2.0 * gz
    y = b + eps                       # numerator fed to atan2 in the reference

    # phi = 0.5 * atan2(y, a)  ->  (cos(phi), sin(phi)) via half-angle identities:
    #   cos(phi) = sqrt((1 + cos t)/2),  sin(phi) = sign(y)*sqrt((1 - cos t)/2),
    #   cos t = a / |(a, y)|.
    r2 = a * a + y * y
    inv_r = lax.rsqrt(jnp.maximum(r2, tiny))          # guarded rsqrt (no divide)
    cos_t = jnp.where(r2 > 0.0, a * inv_r, 1.0)       # atan2(0, 0) == 0 convention
    cos_phi = jnp.sqrt(jnp.maximum(0.5 * (1.0 + cos_t), 0.0))
    sin_mag = jnp.sqrt(jnp.maximum(0.5 * (1.0 - cos_t), 0.0))
    sin_phi = jnp.where(y >= 0.0, sin_mag, -sin_mag)

    # tangent_undefined = (a == 0) & (b == 0)  ->  vec2_const(0.0, 0.01)
    undefined = jnp.logical_and(a == 0.0, b == 0.0)
    o_ref[0, 0, :, :] = jnp.where(undefined, 0.0, cos_phi).astype(o_ref.dtype)
    o_ref[0, 1, :, :] = jnp.where(undefined, 0.01, sin_phi).astype(o_ref.dtype)


def _pick_lane_width(s):
    """Largest multiple of 128 that evenly divides the flattened spatial size."""
    for lane in (2048, 1024, 512, 256, 128):
        if s % lane == 0:
            return lane
    return None


def tangent_flow_effect(x, *, vmem_tile_elems=256 * 1024):
    """x: (N, C, H, W) with C >= 3. Returns (N, 2, H, W)."""
    n, c, h, w = x.shape
    assert c >= 3, "TangentFlowEffect needs at least 3 input channels"
    s = h * w

    lane = _pick_lane_width(s)
    if lane is not None:
        # Lane-dense layout: flatten H*W -> (rows, cols) with cols % 128 == 0.
        rows, cols = s // lane, lane
        x_in = x.reshape(n, c, rows, cols)
    else:
        # TODO(synk): pad W to a multiple of 128 for lane-dense stores on odd shapes.
        rows, cols = h, w
        x_in = x

    # Row tile: fill the VMEM budget, multiple of 8 sublanes (or the full extent).
    budget_rows = max(vmem_tile_elems // cols, 8)
    if rows <= budget_rows:
        tr = rows
    else:
        tr = max((budget_rows // 8) * 8, 8)

    grid = (n, pl.cdiv(rows, tr))

    # 3 input + 2 output channel planes per step, double-buffered by the pipeline.
    bytes_per_step = (3 + 2) * tr * cols * x.dtype.itemsize * 2
    vmem_limit = int(min(max(32 << 20, bytes_per_step + (8 << 20)), 64 << 20))

    out = pl.pallas_call(
        _tangent_flow_kernel,
        out_shape=jax.ShapeDtypeStruct((n, 2, rows, cols), x.dtype),
        grid_spec=pltpu.PrefetchScalarGridSpec(
            num_scalar_prefetch=0,
            grid=grid,
            # Only channels 0..2 are ever DMA'd (block size 3 on the channel dim).
            in_specs=[pl.BlockSpec((1, 3, tr, cols), lambda i, j: (i, 0, j, 0))],
            out_specs=pl.BlockSpec((1, 2, tr, cols), lambda i, j: (i, 0, j, 0)),
        ),
        compiler_params=pltpu.CompilerParams(
            dimension_semantics=("parallel", "parallel"),
            vmem_limit_bytes=vmem_limit,
        ),
    )(x_in)
    return out.reshape(n, 2, h, w)


def tangent_flow_ref(x):
    """Pure-JAX reference mirroring the PyTorch forward exactly."""
    gx, gy, gz = x[:, 0:1], x[:, 1:2], x[:, 2:3]
    b = -2.0 * gz
    a = gy - gx
    phi = 0.5 * jnp.arctan2(b + jnp.finfo(x.dtype).eps, a)
    tangent = jnp.concatenate([jnp.cos(phi), jnp.sin(phi)], axis=1)
    undefined = jnp.logical_and(a == 0.0, b == 0.0)
    const = jnp.broadcast_to(
        jnp.array([0.0, 0.01], x.dtype).reshape(1, 2, 1, 1), tangent.shape)
    return jnp.where(undefined, const, tangent)


if __name__ == "__main__":
    key = jax.random.PRNGKey(0)
    N, C, H, W = 2, 4, 16, 16
    x = jax.random.normal(key, (N, C, H, W), dtype=jnp.float32)
    # Force a patch where a == 0 and b == 0 to exercise the undefined-tangent branch.
    x = x.at[:, 0, :4, :4].set(0.5)
    x = x.at[:, 1, :4, :4].set(0.5)
    x = x.at[:, 2, :4, :4].set(0.0)

    out = jax.block_until_ready(tangent_flow_effect(x))
    ref = tangent_flow_ref(x)

    assert out.shape == (N, 2, H, W) and out.dtype == x.dtype
    np.testing.assert_allclose(np.asarray(out), np.asarray(ref),
                               rtol=2e-5, atol=2e-5)
    print("KERNEL_OK")
</pallas_src>

<mosaic_0001>
module attributes {stable_mosaic.version = 11 : i64} {
  func.func @_tangent_flow_kernel(%arg0: i32, %arg1: i32, %arg2: memref<1x3x1x256xf32, #tpu.memory_space<vmem>>, %arg3: memref<1x2x1x256xf32, #tpu.memory_space<vmem>>) attributes {dimension_semantics = [#tpu.dimension_semantics<parallel>, #tpu.dimension_semantics<parallel>], iteration_bounds = array<i64: 2, 1>, scalar_prefetch = 0 : i64, scratch_operands = 0 : i64, tpu.core_type = #tpu.core_type<tc>, window_params = [{transform_indices = @transform_0, window_bounds = array<i64: 1, 3, 1, 256>}, {transform_indices = @transform_1, window_bounds = array<i64: 1, 2, 1, 256>}]} {
    %c0 = arith.constant 0 : index
    %c0_0 = arith.constant 0 : index
    %c0_1 = arith.constant 0 : index
    %c0_2 = arith.constant 0 : index
    %0 = vector.load %arg2[%c0, %c0_0, %c0_1, %c0_2] : memref<1x3x1x256xf32, #tpu.memory_space<vmem>>, vector<1x1x1x256xf32>
    %1 = vector.shape_cast %0 : vector<1x1x1x256xf32> to vector<1x256xf32>
    %c0_3 = arith.constant 0 : index
    %c1 = arith.constant 1 : index
    %c0_4 = arith.constant 0 : index
    %c0_5 = arith.constant 0 : index
    %2 = vector.load %arg2[%c0_3, %c1, %c0_4, %c0_5] : memref<1x3x1x256xf32, #tpu.memory_space<vmem>>, vector<1x1x1x256xf32>
    %3 = vector.shape_cast %2 : vector<1x1x1x256xf32> to vector<1x256xf32>
    %c0_6 = arith.constant 0 : index
    %c2 = arith.constant 2 : index
    %c0_7 = arith.constant 0 : index
    %c0_8 = arith.constant 0 : index
    %4 = vector.load %arg2[%c0_6, %c2, %c0_7, %c0_8] : memref<1x3x1x256xf32, #tpu.memory_space<vmem>>, vector<1x1x1x256xf32>
    %5 = vector.shape_cast %4 : vector<1x1x1x256xf32> to vector<1x256xf32>
    %6 = arith.subf %3, %1 : vector<1x256xf32>
    %cst = arith.constant -2.000000e+00 : f32
    %7 = vector.broadcast %cst : f32 to vector<1x256xf32>
    %8 = arith.mulf %7, %5 : vector<1x256xf32>
    %cst_9 = arith.constant 1.1920929E-7 : f32
    %9 = vector.broadcast %cst_9 : f32 to vector<1x256xf32>
    %10 = arith.addf %8, %9 : vector<1x256xf32>
    %11 = arith.mulf %6, %6 : vector<1x256xf32>
    %12 = arith.mulf %10, %10 : vector<1x256xf32>
    %13 = arith.addf %11, %12 : vector<1x256xf32>
    %cst_10 = arith.constant 1.17549435E-38 : f32
    %14 = vector.broadcast %cst_10 : f32 to vector<1x256xf32>
    %15 = arith.maximumf %13, %14 : vector<1x256xf32>
    %16 = math.rsqrt %15 : vector<1x256xf32>
    %cst_11 = arith.constant 0.000000e+00 : f32
    %17 = vector.broadcast %cst_11 : f32 to vector<1x256xf32>
    %18 = arith.cmpf ogt, %13, %17 : vector<1x256xf32>
    %19 = arith.mulf %6, %16 : vector<1x256xf32>
    %cst_12 = arith.constant 1.000000e+00 : f32
    %20 = vector.broadcast %cst_12 : f32 to vector<1x256xf32>
    %21 = arith.select %18, %19, %20 : vector<1x256xi1>, vector<1x256xf32>
    %cst_13 = arith.constant 1.000000e+00 : f32
    %22 = vector.broadcast %cst_13 : f32 to vector<1x256xf32>
    %23 = arith.addf %22, %21 : vector<1x256xf32>
    %cst_14 = arith.constant 5.000000e-01 : f32
    %24 = vector.broadcast %cst_14 : f32 to vector<1x256xf32>
    %25 = arith.mulf %24, %23 : vector<1x256xf32>
    %cst_15 = arith.constant 0.000000e+00 : f32
    %26 = vector.broadcast %cst_15 : f32 to vector<1x256xf32>
    %27 = arith.maximumf %25, %26 : vector<1x256xf32>
    %28 = math.sqrt %27 : vector<1x256xf32>
    %cst_16 = arith.constant 1.000000e+00 : f32
    %29 = vector.broadcast %cst_16 : f32 to vector<1x256xf32>
    %30 = arith.subf %29, %21 : vector<1x256xf32>
    %cst_17 = arith.constant 5.000000e-01 : f32
    %31 = vector.broadcast %cst_17 : f32 to vector<1x256xf32>
    %32 = arith.mulf %31, %30 : vector<1x256xf32>
    %cst_18 = arith.constant 0.000000e+00 : f32
    %33 = vector.broadcast %cst_18 : f32 to vector<1x256xf32>
    %34 = arith.maximumf %32, %33 : vector<1x256xf32>
    %35 = math.sqrt %34 : vector<1x256xf32>
    %cst_19 = arith.constant 0.000000e+00 : f32
    %36 = vector.broadcast %cst_19 : f32 to vector<1x256xf32>
    %37 = arith.cmpf oge, %10, %36 : vector<1x256xf32>
    %cst_20 = arith.constant 0.000000e+00 : f32
    %38 = vector.broadcast %cst_20 : f32 to vector<1x256xf32>
    %39 = arith.subf %38, %35 : vector<1x256xf32>
    %40 = arith.select %37, %35, %39 : vector<1x256xi1>, vector<1x256xf32>
    %cst_21 = arith.constant 0.000000e+00 : f32
    %41 = vector.broadcast %cst_21 : f32 to vector<1x256xf32>
    %42 = arith.cmpf oeq, %6, %41 : vector<1x256xf32>
    %cst_22 = arith.constant 0.000000e+00 : f32
    %43 = vector.broadcast %cst_22 : f32 to vector<1x256xf32>
    %44 = arith.cmpf oeq, %8, %43 : vector<1x256xf32>
    %45 = arith.andi %42, %44 : vector<1x256xi1>
    %cst_23 = arith.constant 0.000000e+00 : f32
    %46 = vector.broadcast %cst_23 : f32 to vector<1x256xf32>
    %47 = arith.select %45, %46, %28 : vector<1x256xi1>, vector<1x256xf32>
    %c0_24 = arith.constant 0 : index
    %c0_25 = arith.constant 0 : index
    %c0_26 = arith.constant 0 : index
    %c0_27 = arith.constant 0 : index
    %48 = vector.load %arg3[%c0_24, %c0_25, %c0_26, %c0_27] : memref<1x2x1x256xf32, #tpu.memory_space<vmem>>, vector<1x1x1x256xf32>
    %49 = vector.shape_cast %48 : vector<1x1x1x256xf32> to vector<1x256xf32>
    %50 = vector.shape_cast %47 : vector<1x256xf32> to vector<1x1x1x256xf32>
    tpu.vector_store %arg3[%c0_24, %c0_25, %c0_26, %c0_27], %50 {strides = array<i32>} : memref<1x2x1x256xf32, #tpu.memory_space<vmem>>, vector<1x1x1x256xf32>,
    %cst_28 = arith.constant 0.00999999977 : f32
    %51 = vector.broadcast %cst_28 : f32 to vector<1x256xf32>
    %52 = arith.select %45, %51, %40 : vector<1x256xi1>, vector<1x256xf32>
    %c0_29 = arith.constant 0 : index
    %c1_30 = arith.constant 1 : index
    %c0_31 = arith.constant 0 : index
    %c0_32 = arith.constant 0 : index
    %53 = vector.load %arg3[%c0_29, %c1_30, %c0_31, %c0_32] : memref<1x2x1x256xf32, #tpu.memory_space<vmem>>, vector<1x1x1x256xf32>
    %54 = vector.shape_cast %53 : vector<1x1x1x256xf32> to vector<1x256xf32>
    %55 = vector.shape_cast %52 : vector<1x256xf32> to vector<1x1x1x256xf32>
    tpu.vector_store %arg3[%c0_29, %c1_30, %c0_31, %c0_32], %55 {strides = array<i32>} : memref<1x2x1x256xf32, #tpu.memory_space<vmem>>, vector<1x1x1x256xf32>,
    return
  }
  func.func @transform_0(%arg0: i32, %arg1: i32) -> (i32, i32, i32, i32) {
    %c0_i32 = arith.constant 0 : i32
    %c0_i32_0 = arith.constant 0 : i32
    %c0_i32_1 = arith.constant 0 : i32
    return %arg0, %c0_i32, %arg1, %c0_i32_0 : i32, i32, i32, i32
  }
  func.func @transform_1(%arg0: i32, %arg1: i32) -> (i32, i32, i32, i32) {
    %c0_i32 = arith.constant 0 : i32
    %c0_i32_0 = arith.constant 0 : i32
    %c0_i32_1 = arith.constant 0 : i32
    return %arg0, %c0_i32, %arg1, %c0_i32_0 : i32, i32, i32, i32
  }
}

</mosaic_0001>

<llo_original>
// kernel: tpu_custom_call.1
$region0: #{tpu_custom_call.1}
  #allocation0 [shape = 'u32[]', space=smem, size = 0x4, offset = 0x4, fixed_abs, tag = 'smem constant byte address 0x4 - core index']
  #allocation1 [shape = 'u32[144,128]{1,0:T(1,128)}', space=vmem, size = 0x12000, scoped, tag = 'internal scratch']
  %s0 = inlined_call_operand.hbm [shape: f32[2,4,1,256], index: 0, kind: input, shape index: {}]
  %s1 = inlined_call_operand.hbm [shape: f32[2,2,1,256], index: 1, kind: output, shape index: {}]
  %s2 = sld [smem:[#allocation0]]
  $region41: #{tpu_custom_call.1} parent=0
    _
  %s4 = ssub.s32 1, %s2
  %s5 = scalar_select 0, %s4, %s2
  $region1: #{tpu_custom_call.1} parent=0
    #allocation2 [shape = 'u8[6144]{0}', space=vmem, size = 0x1800, scoped, tag = 'input window, operand 0']
    #allocation3 [shape = 's32[2]{0}', space=sflag, size = 0x8, scoped, tag = 'scoped memory for tpu_custom_call.1']
    #allocation4 [shape = 's32[2]{0}', space=sflag, size = 0x8, scoped, tag = 'scoped memory for tpu_custom_call.1']
    #allocation5 [shape = 'u8[4096]{0}', space=vmem, size = 0x1000, scoped, tag = 'output window, operand 0']
    %6 = vsyncpa [#allocation3], 0
    %s7 = scalar_lea.sflag [#allocation3], 1
    %8 = vsyncpa %s7, 0
    %9 = vsyncpa [#allocation4], 0
    %s10 = scalar_lea.sflag [#allocation4], 1
    %11 = vsyncpa %s10, 0
    loop: start=0, step=1, limit=4
    $region2: #{tpu_custom_call.1} parent=1 // loop_pre_header
      _
    $region3: #{tpu_custom_call.1} parent=1 // loop_header
      %s13 = sphi 0, %s17
      %p14 = scmp.ge.s32.totalorder %s13, 4
      %s20 = sphi 0, %s32
      %s21 = sphi 0, %s28
      %s22 = sphi 0, %s20
      %s23 = sphi 0, %s21
      %s24 = sphi 0, %s22
      %s25 = sphi 0, %s23
      %s37 = sphi 0, %s39
      %s40 = sphi 0, %s37
      %s41 = sphi 0, %s40
      %s57 = sphi 0, %s41
      %s65 = sphi 0, %s67
      %s68 = sphi 0, %s65
      %s69 = sphi 0, %s68
      %s85 = sphi 0, %s69
    $region4: #{tpu_custom_call.1} parent=1 // loop_header_branch
      %16 = sbr.rel (%p14) target = $region8
    $region5: #{tpu_custom_call.1} parent=1 // loop_body
      %s18 = ssub.s32 %s13, 1
      %s19 = ssub.s32 %s13, 2
      %s26 = sadd.s32 1, %s21
      %p27 = scmp.ge.s32.totalorder %s26, 1
      %s28 = scalar_select %p27, 0, %s26
      %s29 = sadd.s32 1, %s20
      %s30 = scalar_select %p27, %s29, %s20
      %p31 = scmp.ge.s32.totalorder %s30, 2
      %s32 = scalar_select %p31, 0, %s30
      %s33 = ssub.s32 %s20, %s32
      %s34 = ssub.s32 %s21, %s28
      %s35 = sor.u32 %s33, %s34
      %p36 = scmp.eq.s32.totalorder %s35, 0
      %s38 = sadd.s32 %s37, 1
      %s39 = scalar_select %p36, %s37, %s38
      %p42 = pneg %p36
      %p43 = scmp.eq.s32.totalorder %s13, 1
      %p44 = por %p42, %p43
      %p45 = scmp.ne.s32.totalorder %s37, %s40
      %p46 = scmp.eq.s32.totalorder %s13, 0
      %p47 = por %p45, %p46
      %p48 = scmp.ne.s32.totalorder %s37, %s40
      %p49 = scmp.eq.s32.totalorder %s18, 1
      %p50 = por %p48, %p49
      %p51 = scmp.ne.s32.totalorder %s40, %s41
      %p52 = scmp.eq.s32.totalorder %s18, 0
      %p53 = por %p51, %p52
      %p54 = scmp.ne.s32.totalorder %s40, %s41
      %p55 = scmp.eq.s32.totalorder %s19, 1
      %p56 = por %p54, %p55
      %p58 = scmp.ne.s32.totalorder %s41, %s57
      %p59 = scmp.eq.s32.totalorder %s19, 0
      %p60 = por %p58, %p59
      %s61 = ssub.s32 %s20, %s32
      %s62 = ssub.s32 %s21, %s28
      %s63 = sor.u32 %s61, %s62
      %p64 = scmp.eq.s32.totalorder %s63, 0
      %s66 = sadd.s32 %s65, 1
      %s67 = scalar_select %p64, %s65, %s66
      %p70 = pneg %p64
      %p71 = scmp.eq.s32.totalorder %s13, 1
      %p72 = por %p70, %p71
      %p73 = scmp.ne.s32.totalorder %s65, %s68
      %p74 = scmp.eq.s32.totalorder %s13, 0
      %p75 = por %p73, %p74
      %p76 = scmp.ne.s32.totalorder %s65, %s68
      %p77 = scmp.eq.s32.totalorder %s18, 1
      %p78 = por %p76, %p77
      %p79 = scmp.ne.s32.totalorder %s68, %s69
      %p80 = scmp.eq.s32.totalorder %s18, 0
      %p81 = por %p79, %p80
      %p82 = scmp.ne.s32.totalorder %s68, %s69
      %p83 = scmp.eq.s32.totalorder %s19, 1
      %p84 = por %p82, %p83
      %p86 = scmp.ne.s32.totalorder %s69, %s85
      %p87 = scmp.eq.s32.totalorder %s19, 0
      %p88 = por %p86, %p87
      %p89 = scmp.le.s32.totalorder 1, %s13
      %p90 = scmp.lt.s32.totalorder %s13, 3
      %p91 = pnand %p89, %p90
      %p92 = pneg %p91
      // Predicated region
      $region9: #{tpu_custom_call.1} parent=5 // pred_check
        _
      $region10: #{tpu_custom_call.1} parent=5 // pred_check_branch
        %94 = sbr.rel (%p91) target = $region12
      $region11: #{tpu_custom_call.1} parent=5 // pred_region
        %s95 = ssub.s32 %s13, 1
      $region12: #{tpu_custom_call.1} parent=5 // pred_fallthru
        _
      %p96 = scmp.lt.s32.totalorder %s13, 2
      // Predicated region
      $region13: #{tpu_custom_call.1} parent=5 // pred_check
        %p97 = pneg %p96
      $region14: #{tpu_custom_call.1} parent=5 // pred_check_branch
        %99 = sbr.rel (%p97) target = $region16
      $region15: #{tpu_custom_call.1} parent=5 // pred_region
        // Predicated region
        $region17: #{tpu_custom_call.1} parent=15 // pred_check
          %p100 = pneg %p47
        $region18: #{tpu_custom_call.1} parent=15 // pred_check_branch
          %102 = sbr.rel (%p100) target = $region20
        $region19: #{tpu_custom_call.1} parent=15 // pred_region
          %s103 = sand.u32 %s37, 1
          %s104 = scalar_lea.sflag [#allocation3], %s103
          %s105 = sand.u32 %s37, 1
          %s106 = smul.addr %s105, 6
          %s107 = scalar_lea.vmem [#allocation2], %s106
          %s109 = ssub.s32 96, 96
          %110 = vsyncadd %s104, %s109
          %s111 = smul.addr %s21, 2
          %s112 = smul.addr %s20, 8
          %s113 = sadd.s32 %s111, %s112
          %s114 = smul.addr %s113, 16
          %s115 = scalar_lea.hbm %s0, %s114
          %s116 = sshll.u32 %s107, 4
          %s117 = int_to_ptr.vmem [resolvable:$true] %s116
          %122 = dma.hbm_to_vmem [thread:$0]  %s115, 96, %s117, %s104, 32, 32, 2
        $region20: #{tpu_custom_call.1} parent=15 // pred_fallthru
          _
      $region16: #{tpu_custom_call.1} parent=5 // pred_fallthru
        _
      %p123 = scmp.le.s32.totalorder 1, %s13
      %p124 = scmp.lt.s32.totalorder %s13, 3
      %p125 = pnand %p123, %p124
      %p126 = pneg %p125
      // Predicated region
      $region21: #{tpu_custom_call.1} parent=5 // pred_check
        _
      $region22: #{tpu_custom_call.1} parent=5 // pred_check_branch
        %128 = sbr.rel (%p125) target = $region24
      $region23: #{tpu_custom_call.1} parent=5 // pred_region
        %s129 = ssub.s32 %s13, 1
        %s130 = sand.u32 %s40, 1
        %s131 = scalar_lea.sflag [#allocation3], %s130
        %s132 = sand.u32 %s40, 1
        %s133 = smul.addr %s132, 6
        %s134 = scalar_lea.vmem [#allocation2], %s133
        // Predicated region
        $region25: #{tpu_custom_call.1} parent=23 // pred_check
          %p135 = pneg %p53
        $region26: #{tpu_custom_call.1} parent=23 // pred_check_branch
          %137 = sbr.rel (%p135) target = $region28
        $region27: #{tpu_custom_call.1} parent=23 // pred_region
          %138 = dma.done %s131, 96
        $region28: #{tpu_custom_call.1} parent=23 // pred_fallthru
          _
        %s139 = sand.u32 %s40, 1
        %s140 = scalar_lea.sflag [#allocation3], %s139
        %s141 = sand.u32 %s40, 1
        %s142 = smul.addr %s141, 6
        %s143 = scalar_lea.vmem [#allocation2], %s142
        %p144 = pneg %p53
        %p145 = pneg %p50
        %p146 = pneg %p81
        %p147 = pneg %p78
        %s148 = sand.u32 %s68, 1
        %s149 = scalar_lea.sflag [#allocation4], %s148
        %s150 = sand.u32 %s68, 1
        %s151 = smul.addr %s150, 4
        %s152 = scalar_lea.vmem [#allocation5], %s151
        %v153 = vld [vmem:[%s134] sm:$0x3]
        %s154 = scalar_lea.vmem %s134, 2 [#allocation2]
        %v155 = vld [vmem:[%s154] sm:$0x3]
        %s156 = scalar_lea.vmem %s134, 4 [#allocation2]
        %v157 = vld [vmem:[%s156] sm:$0x3]
        %v158 = vsub.f32 %v155, %v153
        %v159 = vmul.f32 %v157, -2.0
        %v160 = vadd.f32 %v159, 1.1920929e-07
        %v161 = vmul.f32 %v158, %v158
        %v162 = vmul.f32 %v160, %v160
        %v163 = vadd.f32 %v161, %v162
        %v164 = vmax.f32 %v163, 1.1754944e-38
        %v165 = vrsqrt.pop %v164
        %vm166 = vcmp.gt.f32.partialorder %v163, 0.0
        %v167 = vmul.f32 %v158, %v165
        %v168 = vsel %vm166, %v167, 1.0
        %v169 = vadd.f32 %v168, 1.0
        %v170 = vmul.f32 %v169, 0.5
        %v171 = vmax.f32 %v170, 0.0
        %v172 = vrsqrt.pop %v171
        %v173 = vmul.f32 %v171, %v172
        %vm174 = vcmp.eq.f32.partialorder %v171, inf
        %v175 = vsel %vm174, %v171, %v173
        %vm176 = vcmp.eq.f32.partialorder %v171, 0.0
        %v177 = vand.u32 %v171, 2147483648
        %v178 = vsel %vm176, %v177, %v175
        %v179 = vsub.f32 1.0, %v168
        %v180 = vmul.f32 %v179, 0.5
        %v181 = vmax.f32 %v180, 0.0
        %v182 = vrsqrt.pop %v181
        %v183 = vmul.f32 %v181, %v182
        %vm184 = vcmp.eq.f32.partialorder %v181, inf
        %v185 = vsel %vm184, %v181, %v183
        %vm186 = vcmp.eq.f32.partialorder %v181, 0.0
        %v187 = vand.u32 %v181, 2147483648
        %v188 = vsel %vm186, %v187, %v185
        %vm189 = vcmp.ge.f32.partialorder %v160, 0.0
        %v190 = vsub.f32 0.0, %v188
        %v191 = vsel %vm189, %v188, %v190
        %vm192 = vcmp.eq.f32.partialorder %v158, 0.0
        %vm193 = vcmp.eq.f32.partialorder %v159, 0.0
        %vm194 = vmand %vm192, %vm193
        %v195 = vsel %vm194, 0.0, %v178
        %v196 = vlaneseq
        %vm197 = vcmp.ge.s32.totalorder %v196, 0
        %vm198 = vcmp.lt.s32.totalorder %v196, 256
        %vm199 = vmand %vm197, %vm198
        %200 = vst.msk [vmem:[%s152] sm:$0x3] %vm199, %v195
        %v201 = vsel %vm194, 0.01, %v191
        %s202 = scalar_lea.vmem %s152, 2 [#allocation5]
        %203 = vst.msk [vmem:[%s202] sm:$0x3] %vm199, %v201
        %s204 = sand.u32 %s68, 1
        %s205 = scalar_lea.sflag [#allocation4], %s204
        %s206 = sand.u32 %s68, 1
        %s207 = smul.addr %s206, 4
        %s208 = scalar_lea.vmem [#allocation5], %s207
        // Predicated region
        $region29: #{tpu_custom_call.1} parent=23 // pred_check
          %p209 = pneg %p78
        $region30: #{tpu_custom_call.1} parent=23 // pred_check_branch
          %211 = sbr.rel (%p209) target = $region32
        $region31: #{tpu_custom_call.1} parent=23 // pred_region
          %s213 = ssub.s32 64, 64
          %214 = vsyncadd %s205, %s213
          %s215 = smul.addr %s23, 2
          %s216 = smul.addr %s22, 4
          %s217 = sadd.s32 %s215, %s216
          %s218 = smul.addr %s217, 16
          %s219 = scalar_lea.hbm %s1, %s218
          %s220 = sshll.u32 %s208, 4
          %s221 = int_to_ptr.vmem [resolvable:$true] %s220
          %226 = dma.vmem_to_hbm [thread:$0]  %s221, 64, %s219, %s205, 32, 32, 2
        $region32: #{tpu_custom_call.1} parent=23 // pred_fallthru
          _
      $region24: #{tpu_custom_call.1} parent=5 // pred_fallthru
        _
      %p227 = scmp.le.s32.totalorder 2, %s13
      // Predicated region
      $region33: #{tpu_custom_call.1} parent=5 // pred_check
        %p228 = pneg %p227
      $region34: #{tpu_custom_call.1} parent=5 // pred_check_branch
        %230 = sbr.rel (%p228) target = $region36
      $region35: #{tpu_custom_call.1} parent=5 // pred_region
        %s231 = ssub.s32 %s13, 2
        // Predicated region
        $region37: #{tpu_custom_call.1} parent=35 // pred_check
          %p232 = pneg %p84
        $region38: #{tpu_custom_call.1} parent=35 // pred_check_branch
          %234 = sbr.rel (%p232) target = $region40
        $region39: #{tpu_custom_call.1} parent=35 // pred_region
          %s235 = sand.u32 %s69, 1
          %s236 = scalar_lea.sflag [#allocation4], %s235
          %s237 = sand.u32 %s69, 1
          %s238 = smul.addr %s237, 4
          %s239 = scalar_lea.vmem [#allocation5], %s238
          %240 = dma.done %s236, 64
        $region40: #{tpu_custom_call.1} parent=35 // pred_fallthru
          _
      $region36: #{tpu_custom_call.1} parent=5 // pred_fallthru
        _
    $region6: #{tpu_custom_call.1} parent=1 // loop_footer
      %s17 = sadd.s32 1, %s13
    $region7: #{tpu_custom_call.1} parent=1 // loop_footer_branch
      %12 = sbr.rel target = $region3
    $region8: #{tpu_custom_call.1} parent=1 // loop_exit
      _
    %241 = vsyncpa [#allocation3], 1
    %s242 = scalar_lea.sflag [#allocation3], 1
    %243 = vsyncpa %s242, 1
    %244 = vsyncpa [#allocation4], 1
    %s245 = scalar_lea.sflag [#allocation4], 1
    %246 = vsyncpa %s245, 1

</llo_original>
